<compile_context>
chip_gen: v7x
topology: tpu7x:2x2x1
jax: 0.10.0
libtpu: 0.0.40
codegen_flags: <defaults>
</compile_context>

<pallas_src>
import jax
import jax.numpy as jnp
from jax import lax
from jax.experimental import pallas as pl
from jax.experimental.pallas import tpu as pltpu


def _make_mean_pool_kernel(seq_chunk):
    """Build a masked-mean-pool kernel that reduces the sequence axis in `seq_chunk` slabs."""

    def mean_pool_kernel(h_ref, len_ref, o_ref):
        # h_ref:   (TB, S, H)  bf16/f32 last_hidden_state tile
        # len_ref: (TB, 1, 1)  f32 per-row valid-token counts
        # o_ref:   (TB, H)     f32 masked-mean pooled feature tile
        tb, S, H = h_ref.shape
        n_chunks = S // seq_chunk  # wrapper guarantees seq_chunk divides S

        lens = len_ref[...]                                           # (TB, 1, 1)
        # MeanPooling clamps sum_mask at 1e-9.  Exact reciprocal: only TB values per step,
        # negligible either way (approx=True would buy nothing measurable here).
        inv = pl.reciprocal(jnp.maximum(lens, 1e-9), approx=False)    # (TB, 1, 1)

        def body(c, acc):
            s0 = pl.multiple_of(c * seq_chunk, seq_chunk)
            # Stream the upcast: only a (TB, seq_chunk, H) f32 slab is live per iteration.
            h_c = h_ref[:, pl.ds(s0, seq_chunk), :].astype(jnp.float32)
            # Prefix mask for this chunk, built in-kernel (no mask DMA, no relayout); the mean
            # denominator is folded into the weights so no separate (TB, 1) divide is needed.
            pos = (lax.broadcasted_iota(jnp.int32, (tb, seq_chunk, 1), 1)
                   + c * seq_chunk).astype(jnp.float32)
            w = jnp.where(pos < lens, inv, 0.0)                       # (TB, seq_chunk, 1)
            # VPU multiply (lane broadcast of w over H) + sublane reduce over the chunk.
            return acc + jnp.sum(h_c * w, axis=1)                     # (TB, H)

        acc = lax.fori_loop(0, n_chunks, body,
                            jnp.zeros((tb, H), jnp.float32), unroll=True)
        o_ref[...] = acc.astype(o_ref.dtype)

    return mean_pool_kernel


def _pick_seq_chunk(S):
    # Small sublane slabs keep the f32 upcast + product temporaries bounded while still giving
    # the VPU plenty of work per iteration; fall back to the whole (small) sequence otherwise.
    for c in (16, 8):
        if S % c == 0:
            return c
    return S


def _pick_batch_tile(B, S, H, h_itemsize, target_step_bytes):
    # Bytes per batch row that get double-buffered each grid step: the bf16 hidden row, the
    # lane-padded (1,1)->(8,128) length word (4 KiB), and the f32 output row.
    row_bytes = S * H * h_itemsize + 4096 + H * 4
    tb = int(max(1, target_step_bytes // row_bytes))
    if tb >= B:
        # Whole batch fits in one tile.  Still emit >= 2 blocks when the batch is big enough so
        # the "parallel" grid axis has work for both TensorCores on v7x; the extra ~0.35 us grid
        # step is noise on single-TC v5e/v6e.
        if B >= 16:
            tb = (B + 1) // 2
        else:
            return B
    if tb % 8 != 0:
        tb = max(8, (tb // 8) * 8)   # keep the (TB, H) output block sublane-aligned
    return max(1, min(tb, B))


def mean_pooling(last_hidden_state, attention_mask, *, batch_tile=None,
                 target_step_bytes=12 * 1024 * 1024):
    """Attention-masked mean pooling over the sequence axis (Pallas, batch-tiled & pipelined)."""
    B, S, H = last_hidden_state.shape
    itemsize = jnp.dtype(last_hidden_state.dtype).itemsize

    if batch_tile is not None:
        tb = max(1, min(int(batch_tile), B))
    else:
        tb = _pick_batch_tile(B, S, H, itemsize, target_step_bytes)
    nb = pl.cdiv(B, tb)
    seq_chunk = _pick_seq_chunk(S)

    # Per-row valid-token counts replace the mask operand entirely (the lane-padded (B, S, 1)
    # mask tile / tiny-descriptor DMA was the dominant overhead of the previous version).
    # TODO(synk): assumes prefix (right-padded) attention masks, the tokenizer's output format.
    lengths = attention_mask.astype(jnp.float32).sum(axis=1).reshape(B, 1, 1)

    kernel = _make_mean_pool_kernel(seq_chunk)

    return pl.pallas_call(
        kernel,
        out_shape=jax.ShapeDtypeStruct((B, H), jnp.float32),
        grid_spec=pl.GridSpec(
            grid=(nb,),
            in_specs=[
                pl.BlockSpec((tb, S, H), lambda i: (i, 0, 0)),
                pl.BlockSpec((tb, 1, 1), lambda i: (i, 0, 0)),
            ],
            out_specs=pl.BlockSpec((tb, H), lambda i: (i, 0)),
        ),
        compiler_params=pltpu.CompilerParams(
            dimension_semantics=("parallel",),          # shard batch tiles across TCs (v7x)
            vmem_limit_bytes=48 * 1024 * 1024,          # load-bearing on v5e; safe on v6e/v7x
        ),
    )(last_hidden_state, lengths)


class UnsModel2:
    """JAX stand-in for uns_model2: synthetic encoder (glue) + Pallas masked mean pooling."""

    def __init__(self, key, vocab_size=100, hidden=384):
        # Deterministic "encoder" parameters (embedding table standing in for model.encode).
        self.embed = jax.random.normal(key, (vocab_size, hidden), dtype=jnp.float32) * 0.02
        self.hidden = hidden

    def encode(self, input_ids):
        # Glue: deterministic embedding lookup -> last_hidden_state (B, S, H), emitted in bf16
        # so the pooling kernel streams half the HBM bytes (accumulation is f32 in-kernel).
        return jnp.take(self.embed, input_ids, axis=0).astype(jnp.bfloat16)

    def forward(self, inputs):
        # TODO(synk): for this synthetic encode path the embedding gather could be fused into the
        # pooling kernel (scalar-prefetch ids); left separate because the real transformer
        # backbone produces last_hidden_state in HBM, which is exactly what the kernel consumes.
        last_hidden_state = self.encode(inputs["input_ids"])
        return mean_pooling(last_hidden_state, inputs["attention_mask"])


def _reference(last_hidden_state, attention_mask):
    h = last_hidden_state.astype(jnp.float32)
    m = attention_mask.astype(jnp.float32)[:, :, None]
    return (h * m).sum(axis=1) / jnp.maximum(m.sum(axis=1), 1e-9)


if __name__ == "__main__":
    key = jax.random.PRNGKey(0)
    k_emb, k_ids, k_ids2, k_len2 = jax.random.split(key, 4)

    H = 384
    model = UnsModel2(k_emb, vocab_size=100, hidden=H)

    # --- small shape matching the module (single-block path) ---
    B, S = 2, 8
    input_ids = jax.random.randint(k_ids, (B, S), 0, 100, dtype=jnp.int32)
    attention_mask = jnp.array(
        [[1] * S,
         [1] * (S - 3) + [0] * 3],
        dtype=jnp.float32,
    )
    inputs = {"input_ids": input_ids, "attention_mask": attention_mask}

    feature = jax.block_until_ready(model.forward(inputs))
    ref = _reference(model.encode(input_ids), attention_mask)
    assert feature.shape == (B, H)
    assert jnp.allclose(feature, ref, atol=1e-4, rtol=1e-4)

    # --- larger batch exercising batch tiling + a partial last block ---
    B2, S2 = 20, 16
    input_ids2 = jax.random.randint(k_ids2, (B2, S2), 0, 100, dtype=jnp.int32)
    lens = jax.random.randint(k_len2, (B2,), 1, S2 + 1, dtype=jnp.int32)
    attention_mask2 = (jnp.arange(S2)[None, :] < lens[:, None]).astype(jnp.float32)

    h2 = model.encode(input_ids2)
    feature2 = jax.block_until_ready(mean_pooling(h2, attention_mask2, batch_tile=8))
    ref2 = _reference(h2, attention_mask2)
    assert feature2.shape == (B2, H)
    assert jnp.allclose(feature2, ref2, atol=1e-4, rtol=1e-4)

    # --- auto-tiled path (exercises the >=2-block split for v7x's two TensorCores) ---
    feature3 = jax.block_until_ready(mean_pooling(h2, attention_mask2))
    assert jnp.allclose(feature3, ref2, atol=1e-4, rtol=1e-4)

    print("KERNEL_OK")
</pallas_src>

<mosaic_0001>
module attributes {stable_mosaic.version = 11 : i64} {
  func.func @mean_pool_kernel(%arg0: i32, %arg1: memref<2x8x384xbf16, #tpu.memory_space<vmem>>, %arg2: memref<2x1x1xf32, #tpu.memory_space<vmem>>, %arg3: memref<2x384xf32, #tpu.memory_space<vmem>>) attributes {dimension_semantics = [#tpu.dimension_semantics<parallel>], iteration_bounds = array<i64: 1>, scalar_prefetch = 0 : i64, scratch_operands = 0 : i64, tpu.core_type = #tpu.core_type<tc>, window_params = [{transform_indices = @transform_0, window_bounds = array<i64: 2, 8, 384>}, {transform_indices = @transform_1, window_bounds = array<i64: 2, 1, 1>}, {transform_indices = @transform_2, window_bounds = array<i64: 2, 384>}]} {
    %c0 = arith.constant 0 : index
    %c0_0 = arith.constant 0 : index
    %c0_1 = arith.constant 0 : index
    %0 = vector.load %arg2[%c0, %c0_0, %c0_1] : memref<2x1x1xf32, #tpu.memory_space<vmem>>, vector<2x1x1xf32>
    %cst = arith.constant 9.99999971E-10 : f32
    %1 = vector.broadcast %cst : f32 to vector<2x1x1xf32>
    %2 = arith.maximumf %0, %1 : vector<2x1x1xf32>
    %3 = tpu.reciprocal %2 : vector<2x1x1xf32> -> vector<2x1x1xf32>
    %cst_2 = arith.constant 0.000000e+00 : f32
    %4 = vector.broadcast %cst_2 : f32 to vector<2x384xf32>
    %c0_i32 = arith.constant 0 : i32
    %c8_i32 = arith.constant 8 : i32
    %5 = arith.muli %c0_i32, %c8_i32 : i32
    %6 = tpu.assume_multiple %5, 8 : i32
    %c0_3 = arith.constant 0 : index
    %7 = arith.index_cast %6 : i32 to index
    %c0_4 = arith.constant 0 : index
    %8 = vector.load %arg1[%c0_3, %7, %c0_4] : memref<2x8x384xbf16, #tpu.memory_space<vmem>>, vector<2x8x384xbf16>
    %9 = arith.extf %8 : vector<2x8x384xbf16> to vector<2x8x384xf32>
    %10 = tpu.iota {dimensions = array<i32: 1>} : vector<2x8x1xi32>
    %c8_i32_5 = arith.constant 8 : i32
    %11 = arith.muli %c0_i32, %c8_i32_5 : i32
    %12 = vector.broadcast %11 : i32 to vector<2x8x1xi32>
    %13 = arith.addi %10, %12 : vector<2x8x1xi32>
    %14 = arith.sitofp %13 : vector<2x8x1xi32> to vector<2x8x1xf32>
    %15 = vector.broadcast %0 : vector<2x1x1xf32> to vector<2x8x1xf32>
    %16 = arith.cmpf olt, %14, %15 : vector<2x8x1xf32>
    %cst_6 = arith.constant 0.000000e+00 : f32
    %17 = vector.shape_cast %3 : vector<2x1x1xf32> to vector<2x1x1xf32>
    %18 = vector.broadcast %17 : vector<2x1x1xf32> to vector<2x8x1xf32>
    %19 = vector.broadcast %cst_6 : f32 to vector<2x8x1xf32>
    %20 = arith.select %16, %18, %19 : vector<2x8x1xi1>, vector<2x8x1xf32>
    %21 = vector.broadcast %20 : vector<2x8x1xf32> to vector<2x8x384xf32>
    %22 = arith.mulf %9, %21 : vector<2x8x384xf32>
    %cst_7 = arith.constant dense<0.000000e+00> : vector<2x384xf32>
    %23 = vector.multi_reduction <add>, %22, %cst_7 [1] : vector<2x8x384xf32> to vector<2x384xf32>
    %24 = arith.addf %4, %23 : vector<2x384xf32>
    %c1_i32 = arith.constant 1 : i32
    %c0_8 = arith.constant 0 : index
    %c0_9 = arith.constant 0 : index
    %25 = vector.load %arg3[%c0_8, %c0_9] : memref<2x384xf32, #tpu.memory_space<vmem>>, vector<2x384xf32>
    tpu.vector_store %arg3[%c0_8, %c0_9], %24 {strides = array<i32>} : memref<2x384xf32, #tpu.memory_space<vmem>>, vector<2x384xf32>,
    return
  }
  func.func @transform_0(%arg0: i32) -> (i32, i32, i32) {
    %c0_i32 = arith.constant 0 : i32
    %c0_i32_0 = arith.constant 0 : i32
    %c0_i32_1 = arith.constant 0 : i32
    return %arg0, %c0_i32, %c0_i32_0 : i32, i32, i32
  }
  func.func @transform_1(%arg0: i32) -> (i32, i32, i32) {
    %c0_i32 = arith.constant 0 : i32
    %c0_i32_0 = arith.constant 0 : i32
    %c0_i32_1 = arith.constant 0 : i32
    return %arg0, %c0_i32, %c0_i32_0 : i32, i32, i32
  }
  func.func @transform_2(%arg0: i32) -> (i32, i32) {
    %c0_i32 = arith.constant 0 : i32
    %c0_i32_0 = arith.constant 0 : i32
    return %arg0, %c0_i32 : i32, i32
  }
}

</mosaic_0001>

<llo_original>
// kernel: tpu_custom_call.1
$region0: #{tpu_custom_call.1}
  #allocation0 [shape = 'u32[]', space=smem, size = 0x4, offset = 0x4, fixed_abs, tag = 'smem constant byte address 0x4 - core index']
  #allocation1 [shape = 'u32[144,128]{1,0:T(1,128)}', space=vmem, size = 0x12000, scoped, tag = 'internal scratch']
  %s0 = inlined_call_operand.hbm [shape: bf16[2,8,384], index: 0, kind: input, shape index: {}]
  %s1 = inlined_call_operand.vmem [shape: f32[2,1,1], index: 1, kind: input, shape index: {}]
  %s2 = inlined_call_operand.hbm [shape: f32[2,384], index: 2, kind: output, shape index: {}]
  %s3 = sld [smem:[#allocation0]]
  $region22: #{tpu_custom_call.1} parent=0
    _
  %s5 = ssub.s32 1, %s3
  %s6 = scalar_select 0, %s5, %s3
  $region1: #{tpu_custom_call.1} parent=0
    #allocation2 [shape = 'u8[12288]{0}', space=vmem, size = 0x3000, scoped, tag = 'input window, operand 0, single buffered']
    #allocation3 [shape = 's32[1]{0}', space=sflag, size = 0x4, scoped, tag = 'scoped memory for tpu_custom_call.1']
    #allocation4 [shape = 's32[1]{0}', space=sflag, size = 0x4, scoped, tag = 'scoped memory for tpu_custom_call.1']
    #allocation5 [shape = 'u8[3072]{0}', space=vmem, size = 0xc00, scoped, tag = 'output window, operand 0, single buffered']
    %7 = vsyncpa [#allocation3], 0
    %8 = vsyncpa [#allocation4], 0
    // Predicated region
    $region2: #{tpu_custom_call.1} parent=1 // pred_check
      _
    $region3: #{tpu_custom_call.1} parent=1 // pred_check_branch
      %10 = sbr.rel (0) target = $region5
    $region4: #{tpu_custom_call.1} parent=1 // pred_region
      %s12 = ssub.s32 384, 384
      %13 = vsyncadd [#allocation3], %s12
      %s14 = sshll.u32 [#allocation2], 4
      %s15 = int_to_ptr.vmem [resolvable:$true] %s14
      %20 = dma.hbm_to_vmem [thread:$0]  %s0, 384, %s15, [#allocation3], 192, 192, 12
    $region5: #{tpu_custom_call.1} parent=1 // pred_fallthru
      _
    // Predicated region
    $region6: #{tpu_custom_call.1} parent=1 // pred_check
      _
    $region7: #{tpu_custom_call.1} parent=1 // pred_check_branch
      %22 = sbr.rel (0) target = $region9
    $region8: #{tpu_custom_call.1} parent=1 // pred_region
      _
    $region9: #{tpu_custom_call.1} parent=1 // pred_fallthru
      _
    // Predicated region
    $region10: #{tpu_custom_call.1} parent=1 // pred_check
      _
    $region11: #{tpu_custom_call.1} parent=1 // pred_check_branch
      %24 = sbr.rel (0) target = $region13
    $region12: #{tpu_custom_call.1} parent=1 // pred_region
      %25 = dma.done [#allocation3], 384
    $region13: #{tpu_custom_call.1} parent=1 // pred_fallthru
      _
    %v26 = vld [vmem:[%s1] sm:$0x1]
    %v27 = vld [vmem:[%s1 + $0x1] sm:$0x1]
    %v28 = vmax.f32 %v26, 1e-09
    %v29 = vmax.f32 %v27, 1e-09
    %v30 = vrcp.pop %v28
    %v31 = vrcp.pop %v29
    %s32 = smul.u32 0, 3
    %s33 = smul.addr %s32, 4
    %s34 = scalar_lea.vmem [#allocation2], %s33
    %v35 = vld [vmem:[%s34] sm:$0xff]
    %v36 = vld [vmem:[%s34 + $0x8] sm:$0xf]
    %v37 = vld [vmem:[%s34 + $0xc] sm:$0xff]
    %v38 = vld [vmem:[%s34 + $0x14] sm:$0xf]
    %v39 = vunpack.c.l.bf16 %v35
    %v40 = vunpack.c.h.bf16 %v35
    %v41 = vunpack.c.l.bf16 %v36
    %v42 = vunpack.c.l.bf16 %v37
    %v43 = vunpack.c.h.bf16 %v37
    %v44 = vunpack.c.l.bf16 %v38
    %v45 = vlaneseq
    %v46 = vshrl.u32 %v45, 7
    %v47 = vcvt.s32.f32 %v46
    %v50 = vlaneseq
    %v51 = vshrl.u32 %v50, 7
    %v52 = vsub.s32 0, %v51
    %v53 = vrot.slane %v26, %v52
    %v54 = vlaneseq
    %v55 = vshrl.u32 %v54, 7
    %v56 = vsub.s32 0, %v55
    %v57 = vrot.slane %v27, %v56
    %vm60 = vcmp.lt.f32.partialorder %v47, %v53
    %vm61 = vcmp.lt.f32.partialorder %v47, %v57
    %v64 = vlaneseq
    %v65 = vshrl.u32 %v64, 7
    %v66 = vsub.s32 0, %v65
    %v67 = vrot.slane %v30, %v66
    %v68 = vlaneseq
    %v69 = vshrl.u32 %v68, 7
    %v70 = vsub.s32 0, %v69
    %v71 = vrot.slane %v31, %v70
    %v74 = vsel %vm60, %v67, 0.0
    %v75 = vsel %vm61, %v71, 0.0
    %77 = vset.pattern.permute.xlu0 0
    %78 = vperm.xlu0 %77, %v74
    %v79 = vpop.permute.xlu0 %78
    %82 = vset.pattern.permute.xlu0 0
    %83 = vperm.xlu0 %82, %v75
    %v84 = vpop.permute.xlu0 %83
    %v86 = vmul.f32 %v39, %v79
    %v87 = vmul.f32 %v40, %v79
    %v88 = vmul.f32 %v41, %v79
    %v89 = vmul.f32 %v42, %v84
    %v90 = vmul.f32 %v43, %v84
    %v91 = vmul.f32 %v44, %v84
    %v92 = vrot.slane %v86, 4
    %v93 = vadd.f32 %v86, %v92
    %v94 = vrot.slane %v93, 2
    %v95 = vadd.f32 %v93, %v94
    %v96 = vrot.slane %v95, 1
    %v97 = vadd.f32 %v95, %v96
    %v98 = vrot.slane %v87, 4
    %v99 = vadd.f32 %v87, %v98
    %v100 = vrot.slane %v99, 2
    %v101 = vadd.f32 %v99, %v100
    %v102 = vrot.slane %v101, 1
    %v103 = vadd.f32 %v101, %v102
    %v104 = vrot.slane %v88, 4
    %v105 = vadd.f32 %v88, %v104
    %v106 = vrot.slane %v105, 2
    %v107 = vadd.f32 %v105, %v106
    %v108 = vrot.slane %v107, 1
    %v109 = vadd.f32 %v107, %v108
    %v110 = vrot.slane %v89, 4
    %v111 = vadd.f32 %v89, %v110
    %v112 = vrot.slane %v111, 2
    %v113 = vadd.f32 %v111, %v112
    %v114 = vrot.slane %v113, 1
    %v115 = vadd.f32 %v113, %v114
    %v116 = vrot.slane %v90, 4
    %v117 = vadd.f32 %v90, %v116
    %v118 = vrot.slane %v117, 2
    %v119 = vadd.f32 %v117, %v118
    %v120 = vrot.slane %v119, 1
    %v121 = vadd.f32 %v119, %v120
    %v122 = vrot.slane %v91, 4
    %v123 = vadd.f32 %v91, %v122
    %v124 = vrot.slane %v123, 2
    %v125 = vadd.f32 %v123, %v124
    %v126 = vrot.slane %v125, 1
    %v127 = vadd.f32 %v125, %v126
    %v128 = vadd.f32 %v97, 0.0
    %v129 = vadd.f32 %v103, 0.0
    %v130 = vadd.f32 %v109, 0.0
    %v131 = vadd.f32 %v115, 0.0
    %v132 = vadd.f32 %v121, 0.0
    %v133 = vadd.f32 %v127, 0.0
    %v140 = vcombine.low %v128, %v129
    %v142 = vunpack.c.l.s4 1983009808
    %v143 = vunpack.c.0.s8 %v142
    %v144 = vlaneseq
    %v145 = vshrl.u32 %v144, 7
    %v146 = vsub.s32 %v143, %v145
    %v147 = vrot.slane %v140, %v146
    %v149 = vunpack.c.l.s4 1983009808
    %v150 = vunpack.c.0.s8 %v149
    %v151 = vlaneseq
    %v152 = vshrl.u32 %v151, 7
    %v153 = vsub.s32 %v150, %v152
    %v154 = vrot.slane %v130, %v153
    %v155 = vcombine.low %v147, %v154
    %v156 = vcombine.low %v131, %v132
    %v158 = vunpack.c.l.s4 1983009808
    %v159 = vunpack.c.0.s8 %v158
    %v160 = vlaneseq
    %v161 = vshrl.u32 %v160, 7
    %v162 = vsub.s32 %v159, %v161
    %v163 = vrot.slane %v156, %v162
    %v165 = vunpack.c.l.s4 1983009808
    %v166 = vunpack.c.0.s8 %v165
    %v167 = vlaneseq
    %v168 = vshrl.u32 %v167, 7
    %v169 = vsub.s32 %v166, %v168
    %v170 = vrot.slane %v133, %v169
    %v171 = vcombine.low %v163, %v170
    %vm172 = vcmask 1044484
    %v173 = vsel %vm172, %v155, %v155
    %vm174 = vcmask 1046534
    %v175 = vsel %vm174, %v155, %v173
    %v176 = vrot.slane %v171, 7
    %vm177 = vcmask 1041409
    %v178 = vsel %vm177, %v176, %v175
    %vm179 = vcmask 1043459
    %v180 = vsel %vm179, %v176, %v178
    %vm181 = vcmask 1045509
    %v182 = vsel %vm181, %v176, %v180
    %vm183 = vcmask 1047559
    %v184 = vsel %vm183, %v176, %v182
    %186 = vst [vmem:[#allocation5] sm:$0x3f] %v184
    // Predicated region
    $region14: #{tpu_custom_call.1} parent=1 // pred_check
      _
    $region15: #{tpu_custom_call.1} parent=1 // pred_check_branch
      %188 = sbr.rel (0) target = $region17
    $region16: #{tpu_custom_call.1} parent=1 // pred_region
      %s190 = ssub.s32 96, 96
      %191 = vsyncadd [#allocation4], %s190
      %s193 = sshll.u32 [#allocation5], 4
      %s194 = int_to_ptr.vmem [resolvable:$true] %s193
      %196 = dma.vmem_to_hbm [thread:$0]  %s194, 96, %s2, [#allocation4]
    $region17: #{tpu_custom_call.1} parent=1 // pred_fallthru
      _
    // Predicated region
    $region18: #{tpu_custom_call.1} parent=1 // pred_check
      _
    $region19: #{tpu_custom_call.1} parent=1 // pred_check_branch
      %198 = sbr.rel (0) target = $region21
    $region20: #{tpu_custom_call.1} parent=1 // pred_region
      %199 = dma.done [#allocation4], 96
    $region21: #{tpu_custom_call.1} parent=1 // pred_fallthru
      _
    %200 = vsyncpa [#allocation3], 1
    %201 = vsyncpa [#allocation4], 1

</llo_original>
